<compile_context>
chip_gen: v6e
topology: v6e:2x2x1
jax: 0.10.0
libtpu: 0.0.40
codegen_flags: <defaults>
</compile_context>

<pallas_src>
import jax
import jax.numpy as jnp
import numpy as np
from jax import lax
from jax.experimental import pallas as pl
from jax.experimental.pallas import tpu as pltpu


# ---------------------------------------------------------------------------
# Fused Pallas kernel: per (batch, query-tile, kv-tile) step do
#   scores^T -> online softmax -> attn @ values ; on the last KV step:
#   normalize, BN-folded output 1x1 conv, bias, residual, store.
# ---------------------------------------------------------------------------
def _nonlocal_flash_kernel(theta_ref, phi_ref, g_ref, w_ref, b_ref, x_ref,
                           out_ref, m_ref, l_ref, acc_ref):
    # theta_ref: (I, TQ)   bf16 query tile (channels-first)
    # phi_ref:   (I, TKV)  bf16 key tile
    # g_ref:     (I, TKV)  bf16 value tile
    # w_ref:     (C, I)    f32 BN-folded output 1x1-conv weight
    # b_ref:     (C, 1)    f32 BN-folded bias
    # x_ref:     (C, TQ)   f32 residual tile
    # out_ref:   (C, TQ)
    # m_ref/l_ref: (1, TQ) f32 running max / denominator
    # acc_ref:   (I, TQ)   f32 running (unnormalized) y^T
    kv = pl.program_id(2)

    @pl.when(kv == 0)
    def _():
        m_ref[...] = jnp.full(m_ref.shape, -jnp.inf, dtype=m_ref.dtype)
        l_ref[...] = jnp.zeros(l_ref.shape, dtype=l_ref.dtype)
        acc_ref[...] = jnp.zeros(acc_ref.shape, dtype=acc_ref.dtype)

    # scores^T: (TKV, TQ). Contract over the I axis of BOTH operands (no
    # host-side key transpose; keys stay lane-dense over their KV axis and
    # queries stay lane-dense over TQ).
    s_t = lax.dot_general(phi_ref[...], theta_ref[...],
                          dimension_numbers=(((0,), (0,)), ((), ())),
                          preferred_element_type=jnp.float32)

    m_prev = m_ref[...]
    m_new = jnp.maximum(m_prev, jnp.max(s_t, axis=0, keepdims=True))
    alpha = jnp.exp(m_prev - m_new)                       # (1, TQ)
    p_t = jnp.exp(s_t - m_new)                            # (TKV, TQ) f32

    l_ref[...] = alpha * l_ref[...] + jnp.sum(p_t, axis=0, keepdims=True)
    acc_ref[...] = alpha * acc_ref[...] + jnp.dot(
        g_ref[...], p_t.astype(g_ref.dtype),
        preferred_element_type=jnp.float32)
    m_ref[...] = m_new

    @pl.when(kv == pl.num_programs(2) - 1)
    def _():
        inv_l = pl.reciprocal(l_ref[...], approx=True)     # EUP slot (~free)
        y_t = acc_ref[...] * inv_l                         # (I, TQ) f32
        z = (jnp.dot(w_ref[...], y_t, preferred_element_type=jnp.float32)
             + b_ref[...] + x_ref[...])
        out_ref[...] = z.astype(out_ref.dtype)


# ---------------------------------------------------------------------------
# VMEM-aware tile selection
# ---------------------------------------------------------------------------
def _pick_kv_tile(nkv):
    for cand in (512, 256, 128):
        if nkv % cand == 0:
            return cand
    return nkv   # single full-KV step (avoids key masking for ragged NKV)


def _vmem_estimate(tq, tkv, inter, ch):
    bf, f4 = 2, 4
    dbl = 2  # double buffering
    in_b = dbl * (inter * tq * bf + 2 * inter * tkv * bf
                  + ch * tq * f4 + ch * inter * f4 + ch * f4)
    out_b = dbl * ch * tq * f4
    scratch = (2 * tq + inter * tq) * f4
    live = 3 * tkv * tq * f4          # s_t / p_t style live intermediates
    return int(1.5 * (in_b + out_b + scratch + live))  # layout-padding fudge


def _pick_q_tile(npad, tkv, inter, ch, budget=12 * 1024 * 1024):
    for cand in (1024, 512, 256, 128):
        if npad % cand == 0 and _vmem_estimate(cand, tkv, inter, ch) <= budget:
            return cand
    return 128


# ---------------------------------------------------------------------------
# One NonLocalBlock (dimension=1) — fused attention/softmax/proj/residual
# ---------------------------------------------------------------------------
def nonlocal_block_pallas(x_bcn, theta, phi, g, w_eff, b_eff):
    """x_bcn: (B, C, N) f32 residual. theta: (B, I, N) bf16 queries.
    phi/g: (B, I, NKV) bf16 keys/values. w_eff: (C, I), b_eff: (C, 1) f32
    BN-folded output projection. Returns (B, C, N) in x_bcn.dtype."""
    B, C, N = x_bcn.shape
    I = theta.shape[1]
    NKV = g.shape[-1]

    # Pad query axis to a lane-aligned multiple of 128 (padded columns are
    # throw-away outputs sliced off below) -> unmasked lane-dense stores.
    Npad = pl.cdiv(N, 128) * 128
    if Npad != N:
        pad = ((0, 0), (0, 0), (0, Npad - N))
        theta = jnp.pad(theta, pad)
        x_in = jnp.pad(x_bcn, pad)
    else:
        x_in = x_bcn

    TKV = _pick_kv_tile(NKV)
    TQ = _pick_q_tile(Npad, TKV, I, C)
    nq = Npad // TQ
    # Megacore occupancy (v7x): make sure there are >= 2 parallel tiles.
    while B * nq < 2 and TQ > 128:
        TQ //= 2
        nq = Npad // TQ
    nkv = NKV // TKV
    grid = (B, nq, nkv)

    cost = pl.CostEstimate(
        flops=int(4 * B * Npad * NKV * I + 2 * B * Npad * C * I),
        transcendentals=int(B * Npad * NKV),
        bytes_accessed=int(theta.size * 2 + 2 * x_in.size * 4
                           + nq * (phi.size + g.size) * 2),
    )

    # NOTE: phi/g index_maps are constant over the query axis, so their DMA
    # only re-fires when the batch or KV index changes. (pl.Buffered(1) on
    # them would halve resident KV VMEM on v7x; left at the default here.)
    out = pl.pallas_call(
        _nonlocal_flash_kernel,
        out_shape=jax.ShapeDtypeStruct((B, C, Npad), x_bcn.dtype),
        grid_spec=pltpu.PrefetchScalarGridSpec(
            num_scalar_prefetch=0,
            grid=grid,
            in_specs=[
                pl.BlockSpec((None, I, TQ), lambda b, q, k: (b, 0, q)),   # theta
                pl.BlockSpec((None, I, TKV), lambda b, q, k: (b, 0, k)),  # phi
                pl.BlockSpec((None, I, TKV), lambda b, q, k: (b, 0, k)),  # g
                pl.BlockSpec((C, I), lambda b, q, k: (0, 0)),             # W_eff
                pl.BlockSpec((C, 1), lambda b, q, k: (0, 0)),             # b_eff
                pl.BlockSpec((None, C, TQ), lambda b, q, k: (b, 0, q)),   # x
            ],
            out_specs=pl.BlockSpec((None, C, TQ), lambda b, q, k: (b, 0, q)),
            scratch_shapes=[
                pltpu.VMEM((1, TQ), jnp.float32),   # m (running max)
                pltpu.VMEM((1, TQ), jnp.float32),   # l (running denom)
                pltpu.VMEM((I, TQ), jnp.float32),   # acc (unnormalized y^T)
            ]),
        compiler_params=pltpu.CompilerParams(
            dimension_semantics=("parallel", "parallel", "arbitrary"),
            vmem_limit_bytes=int(min(
                56 * 1024 * 1024,
                max(32 * 1024 * 1024, 2 * _vmem_estimate(TQ, TKV, I, C)))),
        ),
        cost_estimate=cost,
    )(theta, phi, g, w_eff, b_eff, x_in)

    return out[:, :, :N] if Npad != N else out


# ---------------------------------------------------------------------------
# Hoisted (XLA) pieces: fused 1x1-conv projections, MaxPool1d(2), BN folding
# ---------------------------------------------------------------------------
def _fused_projections(o, p):
    # One matmul for theta/phi/g: stack weights into (3I, C_in) so the
    # activation is read from HBM once and the MXU sees a 3x larger output
    # dim. DEFAULT precision (no f32-HIGHEST MXU emulation).
    w_all = jnp.concatenate([p["w_theta"], p["w_phi"], p["w_g"]], axis=0)
    b_all = jnp.concatenate([p["b_theta"], p["b_phi"], p["b_g"]], axis=0)
    proj = jnp.einsum("ic,bcn->bin", w_all, o) + b_all[None, :, None]
    return jnp.split(proj, 3, axis=1)


def _project_ref(o, w, b):
    # Reference-path 1x1 conv (full f32, HIGHEST precision).
    return (jnp.einsum("ic,bcn->bin", w, o,
                       precision=jax.lax.Precision.HIGHEST)
            + b[None, :, None])


def _maxpool1d_pairs(a):
    # MaxPool1d(kernel_size=2, stride=2) along the last axis.
    B, C, N = a.shape
    return jnp.max(a.reshape(B, C, N // 2, 2), axis=-1)


def _fold_output_affine(p, bn_layer, eps=1e-5):
    # BN(W y + b) = (scale*W) y + (scale*b + beta - scale*mean)
    if bn_layer:
        scale = p["bn_gamma"] / jnp.sqrt(p["bn_var"] + eps)
        w_eff = p["w_w"] * scale[:, None]
        b_eff = p["b_w"] * scale + p["bn_beta"] - p["bn_mean"] * scale
    else:
        w_eff = p["w_w"]
        b_eff = p["b_w"]
    return w_eff, b_eff[:, None]


# ---------------------------------------------------------------------------
# TemporalNonLocalBlock forward (Pallas path)
# ---------------------------------------------------------------------------
def temporal_nonlocal_forward(params, x, *, sub_sample=True, bn_layer=True):
    # x: (B, C, T, H, W)
    B, Cimg, T, H, W = x.shape
    N = Cimg * H * W

    # permute -> (B, T, C, H, W); flatten(2,4) -> (B, T, N). Channels of the
    # 1-D non-local blocks = T; 1-D length = N.
    o = jnp.transpose(x, (0, 2, 1, 3, 4)).reshape(B, T, N)

    for p in params["blocks"]:
        theta, phi, g = _fused_projections(o, p)             # (B, I, N) each
        if sub_sample:
            assert N % 2 == 0, "sub_sample requires an even flattened length"
            phi = _maxpool1d_pairs(phi)                      # (B, I, N//2)
            g = _maxpool1d_pairs(g)                          # (B, I, N//2)
        # bf16 MXU operands; softmax stats / accumulation stay f32 in-kernel.
        theta = theta.astype(jnp.bfloat16)
        phi = phi.astype(jnp.bfloat16)
        g = g.astype(jnp.bfloat16)
        w_eff, b_eff = _fold_output_affine(p, bn_layer)
        o = nonlocal_block_pallas(o, theta, phi, g, w_eff, b_eff)

    o = o.reshape(B, T, Cimg, H, W)
    return jnp.transpose(o, (0, 2, 1, 3, 4))                 # (B, C, T, H, W)


# ---------------------------------------------------------------------------
# Pure-JAX reference mirroring the PyTorch forward (f32, HIGHEST precision)
# ---------------------------------------------------------------------------
def temporal_nonlocal_reference(params, x, *, sub_sample=True, bn_layer=True):
    B, Cimg, T, H, W = x.shape
    N = Cimg * H * W
    o = jnp.transpose(x, (0, 2, 1, 3, 4)).reshape(B, T, N)
    hp = jax.lax.Precision.HIGHEST
    for p in params["blocks"]:
        theta = _project_ref(o, p["w_theta"], p["b_theta"])
        phi = _project_ref(o, p["w_phi"], p["b_phi"])
        g = _project_ref(o, p["w_g"], p["b_g"])
        if sub_sample:
            phi = _maxpool1d_pairs(phi)
            g = _maxpool1d_pairs(g)
        theta_x = jnp.transpose(theta, (0, 2, 1))            # (B, N, I)
        g_x = jnp.transpose(g, (0, 2, 1))                    # (B, NKV, I)
        f = jnp.einsum("bni,bik->bnk", theta_x, phi, precision=hp)
        f_div_c = jax.nn.softmax(f, axis=-1)
        y = jnp.einsum("bnk,bki->bni", f_div_c, g_x, precision=hp)
        y = jnp.transpose(y, (0, 2, 1))                      # (B, I, N)
        w_y = (jnp.einsum("ci,bin->bcn", p["w_w"], y, precision=hp)
               + p["b_w"][None, :, None])
        if bn_layer:
            scale = p["bn_gamma"] / jnp.sqrt(p["bn_var"] + 1e-5)
            w_y = (w_y * scale[None, :, None]
                   + (p["bn_beta"] - p["bn_mean"] * scale)[None, :, None])
        o = w_y + o
    o = o.reshape(B, T, Cimg, H, W)
    return jnp.transpose(o, (0, 2, 1, 3, 4))


# ---------------------------------------------------------------------------
# Parameter init. NOTE: the PyTorch module zero-inits the W/BN output path
# (so z == x at init); here we use nonzero random parameters so the attention
# path is numerically exercised. BN parameters are inference-mode stats.
# ---------------------------------------------------------------------------
def init_params(key, numblocks, channels, inter, bn_layer=True):
    blocks = []
    std = 0.25
    for _ in range(numblocks):
        key, *ks = jax.random.split(key, 13)
        blk = {
            "w_theta": std * jax.random.normal(ks[0], (inter, channels), jnp.float32),
            "b_theta": std * jax.random.normal(ks[1], (inter,), jnp.float32),
            "w_phi": std * jax.random.normal(ks[2], (inter, channels), jnp.float32),
            "b_phi": std * jax.random.normal(ks[3], (inter,), jnp.float32),
            "w_g": std * jax.random.normal(ks[4], (inter, channels), jnp.float32),
            "b_g": std * jax.random.normal(ks[5], (inter,), jnp.float32),
            "w_w": std * jax.random.normal(ks[6], (channels, inter), jnp.float32),
            "b_w": std * jax.random.normal(ks[7], (channels,), jnp.float32),
        }
        if bn_layer:
            blk["bn_gamma"] = 1.0 + 0.1 * jax.random.normal(ks[8], (channels,), jnp.float32)
            blk["bn_beta"] = 0.1 * jax.random.normal(ks[9], (channels,), jnp.float32)
            blk["bn_mean"] = 0.1 * jax.random.normal(ks[10], (channels,), jnp.float32)
            blk["bn_var"] = jnp.abs(1.0 + 0.1 * jax.random.normal(ks[11], (channels,), jnp.float32))
        blocks.append(blk)
    return {"blocks": blocks}


if __name__ == "__main__":
    # Small shapes consistent with the module: the Conv1d channel dim is T,
    # the 1-D length is N = C*H*W (= 256 here), inter_channels is explicit.
    B, Cimg, T, H, W = 2, 4, 8, 8, 8
    numblocks = 2
    channels = T            # in_channels of each 1-D NonLocalBlock
    inter = 4               # inter_channels
    sub_sample = True
    bn_layer = True

    key = jax.random.PRNGKey(0)
    key, kp, kx = jax.random.split(key, 3)
    params = init_params(kp, numblocks, channels, inter, bn_layer=bn_layer)
    x = jax.random.normal(kx, (B, Cimg, T, H, W), dtype=jnp.float32)

    out = jax.block_until_ready(
        temporal_nonlocal_forward(params, x, sub_sample=sub_sample,
                                  bn_layer=bn_layer))
    ref = jax.block_until_ready(
        temporal_nonlocal_reference(params, x, sub_sample=sub_sample,
                                    bn_layer=bn_layer))

    assert out.shape == (B, Cimg, T, H, W), out.shape
    # bf16 MXU operands in the fused path vs a full-f32 HIGHEST reference.
    np.testing.assert_allclose(np.asarray(out), np.asarray(ref),
                               rtol=2e-2, atol=2e-2)
    print("KERNEL_OK")
</pallas_src>

<mosaic_0001>
module attributes {stable_mosaic.version = 11 : i64} {
  func.func @_nonlocal_flash_kernel(%arg0: i32, %arg1: i32, %arg2: i32, %arg3: memref<1x4x256xbf16, #tpu.memory_space<vmem>>, %arg4: memref<1x4x128xbf16, #tpu.memory_space<vmem>>, %arg5: memref<1x4x128xbf16, #tpu.memory_space<vmem>>, %arg6: memref<8x4xf32, #tpu.memory_space<vmem>>, %arg7: memref<8x1xf32, #tpu.memory_space<vmem>>, %arg8: memref<1x8x256xf32, #tpu.memory_space<vmem>>, %arg9: memref<1x8x256xf32, #tpu.memory_space<vmem>>, %arg10: memref<1x256xf32, #tpu.memory_space<vmem>>, %arg11: memref<1x256xf32, #tpu.memory_space<vmem>>, %arg12: memref<4x256xf32, #tpu.memory_space<vmem>>) attributes {dimension_semantics = [#tpu.dimension_semantics<parallel>, #tpu.dimension_semantics<parallel>, #tpu.dimension_semantics<arbitrary>], iteration_bounds = array<i64: 2, 1, 1>, scalar_prefetch = 0 : i64, scratch_operands = 3 : i64, tpu.core_type = #tpu.core_type<tc>, window_params = [{transform_indices = @transform_0, window_bounds = array<i64: 1, 4, 256>}, {transform_indices = @transform_1, window_bounds = array<i64: 1, 4, 128>}, {transform_indices = @transform_2, window_bounds = array<i64: 1, 4, 128>}, {pipeline_mode = #tpu.pipeline_mode<synchronous>, transform_indices = @transform_3, window_bounds = array<i64: 8, 4>}, {pipeline_mode = #tpu.pipeline_mode<synchronous>, transform_indices = @transform_4, window_bounds = array<i64: 8, 1>}, {transform_indices = @transform_5, window_bounds = array<i64: 1, 8, 256>}, {transform_indices = @transform_6, window_bounds = array<i64: 1, 8, 256>}]} {
    %c0_i32 = arith.constant 0 : i32
    %0 = arith.cmpi eq, %arg2, %c0_i32 : i32
    %1 = arith.extui %0 : i1 to i32
    %c0_i32_0 = arith.constant 0 : i32
    %2 = arith.cmpi ne, %1, %c0_i32_0 : i32
    scf.if %2 {
      %cst_26 = arith.constant 0xFF800000 : f32
      %36 = vector.broadcast %cst_26 : f32 to vector<1x256xf32>
      %c0_27 = arith.constant 0 : index
      %c0_28 = arith.constant 0 : index
      %37 = vector.load %arg10[%c0_27, %c0_28] : memref<1x256xf32, #tpu.memory_space<vmem>>, vector<1x256xf32>
      tpu.vector_store %arg10[%c0_27, %c0_28], %36 {strides = array<i32>} : memref<1x256xf32, #tpu.memory_space<vmem>>, vector<1x256xf32>,
      %cst_29 = arith.constant 0.000000e+00 : f32
      %38 = vector.broadcast %cst_29 : f32 to vector<1x256xf32>
      %c0_30 = arith.constant 0 : index
      %c0_31 = arith.constant 0 : index
      %39 = vector.load %arg11[%c0_30, %c0_31] : memref<1x256xf32, #tpu.memory_space<vmem>>, vector<1x256xf32>
      tpu.vector_store %arg11[%c0_30, %c0_31], %38 {strides = array<i32>} : memref<1x256xf32, #tpu.memory_space<vmem>>, vector<1x256xf32>,
      %cst_32 = arith.constant 0.000000e+00 : f32
      %40 = vector.broadcast %cst_32 : f32 to vector<4x256xf32>
      %c0_33 = arith.constant 0 : index
      %c0_34 = arith.constant 0 : index
      %41 = vector.load %arg12[%c0_33, %c0_34] : memref<4x256xf32, #tpu.memory_space<vmem>>, vector<4x256xf32>
      tpu.vector_store %arg12[%c0_33, %c0_34], %40 {strides = array<i32>} : memref<4x256xf32, #tpu.memory_space<vmem>>, vector<4x256xf32>,
    } else {
    }
    %c0 = arith.constant 0 : index
    %c0_1 = arith.constant 0 : index
    %c0_2 = arith.constant 0 : index
    %3 = vector.load %arg4[%c0, %c0_1, %c0_2] : memref<1x4x128xbf16, #tpu.memory_space<vmem>>, vector<1x4x128xbf16>
    %4 = vector.shape_cast %3 : vector<1x4x128xbf16> to vector<4x128xbf16>
    %c0_3 = arith.constant 0 : index
    %c0_4 = arith.constant 0 : index
    %c0_5 = arith.constant 0 : index
    %5 = vector.load %arg3[%c0_3, %c0_4, %c0_5] : memref<1x4x256xbf16, #tpu.memory_space<vmem>>, vector<1x4x256xbf16>
    %6 = vector.shape_cast %5 : vector<1x4x256xbf16> to vector<4x256xbf16>
    %cst = arith.constant dense<0.000000e+00> : vector<128x256xf32>
    %7 = tpu.matmul %4, %6, %cst {dimension_numbers = #tpu.dot_dimension_numbers<[0], [0], [1], [1], [0, 1, 1, 1], [], []>} : vector<4x128xbf16>, vector<4x256xbf16>, vector<128x256xf32> -> vector<128x256xf32>
    %c0_6 = arith.constant 0 : index
    %c0_7 = arith.constant 0 : index
    %8 = vector.load %arg10[%c0_6, %c0_7] : memref<1x256xf32, #tpu.memory_space<vmem>>, vector<1x256xf32>
    %cst_8 = arith.constant dense<0xFF800000> : vector<256xf32>
    %9 = vector.multi_reduction <maximumf>, %7, %cst_8 [0] : vector<128x256xf32> to vector<256xf32>
    %10 = vector.shape_cast %9 : vector<256xf32> to vector<1x256xf32>
    %11 = arith.maximumf %8, %10 : vector<1x256xf32>
    %12 = arith.subf %8, %11 : vector<1x256xf32>
    %13 = math.exp %12 : vector<1x256xf32>
    %14 = vector.broadcast %11 : vector<1x256xf32> to vector<128x256xf32>
    %15 = arith.subf %7, %14 : vector<128x256xf32>
    %16 = math.exp %15 : vector<128x256xf32>
    %c0_9 = arith.constant 0 : index
    %c0_10 = arith.constant 0 : index
    %17 = vector.load %arg11[%c0_9, %c0_10] : memref<1x256xf32, #tpu.memory_space<vmem>>, vector<1x256xf32>
    %18 = arith.mulf %13, %17 : vector<1x256xf32>
    %cst_11 = arith.constant dense<0.000000e+00> : vector<256xf32>
    %19 = vector.multi_reduction <add>, %16, %cst_11 [0] : vector<128x256xf32> to vector<256xf32>
    %20 = vector.shape_cast %19 : vector<256xf32> to vector<1x256xf32>
    %21 = arith.addf %18, %20 : vector<1x256xf32>
    %c0_12 = arith.constant 0 : index
    %c0_13 = arith.constant 0 : index
    %22 = vector.load %arg11[%c0_12, %c0_13] : memref<1x256xf32, #tpu.memory_space<vmem>>, vector<1x256xf32>
    tpu.vector_store %arg11[%c0_12, %c0_13], %21 {strides = array<i32>} : memref<1x256xf32, #tpu.memory_space<vmem>>, vector<1x256xf32>,
    %c0_14 = arith.constant 0 : index
    %c0_15 = arith.constant 0 : index
    %23 = vector.load %arg12[%c0_14, %c0_15] : memref<4x256xf32, #tpu.memory_space<vmem>>, vector<4x256xf32>
    %24 = vector.broadcast %13 : vector<1x256xf32> to vector<4x256xf32>
    %25 = arith.mulf %24, %23 : vector<4x256xf32>
    %c0_16 = arith.constant 0 : index
    %c0_17 = arith.constant 0 : index
    %c0_18 = arith.constant 0 : index
    %26 = vector.load %arg5[%c0_16, %c0_17, %c0_18] : memref<1x4x128xbf16, #tpu.memory_space<vmem>>, vector<1x4x128xbf16>
    %27 = vector.shape_cast %26 : vector<1x4x128xbf16> to vector<4x128xbf16>
    %28 = arith.truncf %16 : vector<128x256xf32> to vector<128x256xbf16>
    %cst_19 = arith.constant dense<0.000000e+00> : vector<4x256xf32>
    %29 = tpu.matmul %27, %28, %cst_19 {dimension_numbers = #tpu.dot_dimension_numbers<[1], [0], [0], [1], [0, 0, 1, 1], [], []>} : vector<4x128xbf16>, vector<128x256xbf16>, vector<4x256xf32> -> vector<4x256xf32>
    %30 = arith.addf %25, %29 : vector<4x256xf32>
    %c0_20 = arith.constant 0 : index
    %c0_21 = arith.constant 0 : index
    %31 = vector.load %arg12[%c0_20, %c0_21] : memref<4x256xf32, #tpu.memory_space<vmem>>, vector<4x256xf32>
    tpu.vector_store %arg12[%c0_20, %c0_21], %30 {strides = array<i32>} : memref<4x256xf32, #tpu.memory_space<vmem>>, vector<4x256xf32>,
    %c0_22 = arith.constant 0 : index
    %c0_23 = arith.constant 0 : index
    %32 = vector.load %arg10[%c0_22, %c0_23] : memref<1x256xf32, #tpu.memory_space<vmem>>, vector<1x256xf32>
    tpu.vector_store %arg10[%c0_22, %c0_23], %11 {strides = array<i32>} : memref<1x256xf32, #tpu.memory_space<vmem>>, vector<1x256xf32>,
    %c0_i32_24 = arith.constant 0 : i32
    %33 = arith.cmpi eq, %arg2, %c0_i32_24 : i32
    %34 = arith.extui %33 : i1 to i32
    %c0_i32_25 = arith.constant 0 : i32
    %35 = arith.cmpi ne, %34, %c0_i32_25 : i32
    scf.if %35 {
      %c0_26 = arith.constant 0 : index
      %c0_27 = arith.constant 0 : index
      %36 = vector.load %arg11[%c0_26, %c0_27] : memref<1x256xf32, #tpu.memory_space<vmem>>, vector<1x256xf32>
      %37 = tpu.reciprocal %36 {approx = true} : vector<1x256xf32> -> vector<1x256xf32>
      %c0_28 = arith.constant 0 : index
      %c0_29 = arith.constant 0 : index
      %38 = vector.load %arg12[%c0_28, %c0_29] : memref<4x256xf32, #tpu.memory_space<vmem>>, vector<4x256xf32>
      %39 = vector.broadcast %37 : vector<1x256xf32> to vector<4x256xf32>
      %40 = arith.mulf %38, %39 : vector<4x256xf32>
      %c0_30 = arith.constant 0 : index
      %c0_31 = arith.constant 0 : index
      %41 = vector.load %arg6[%c0_30, %c0_31] : memref<8x4xf32, #tpu.memory_space<vmem>>, vector<8x4xf32>
      %cst_32 = arith.constant dense<0.000000e+00> : vector<8x256xf32>
      %42 = tpu.matmul %41, %40, %cst_32 {dimension_numbers = #tpu.dot_dimension_numbers<[1], [0], [0], [1], [0, 0, 1, 1], [], []>} : vector<8x4xf32>, vector<4x256xf32>, vector<8x256xf32> -> vector<8x256xf32>
      %c0_33 = arith.constant 0 : index
      %c0_34 = arith.constant 0 : index
      %43 = vector.load %arg7[%c0_33, %c0_34] : memref<8x1xf32, #tpu.memory_space<vmem>>, vector<8x1xf32>
      %44 = vector.broadcast %43 : vector<8x1xf32> to vector<8x256xf32>
      %45 = arith.addf %42, %44 : vector<8x256xf32>
      %c0_35 = arith.constant 0 : index
      %c0_36 = arith.constant 0 : index
      %c0_37 = arith.constant 0 : index
      %46 = vector.load %arg8[%c0_35, %c0_36, %c0_37] : memref<1x8x256xf32, #tpu.memory_space<vmem>>, vector<1x8x256xf32>
      %47 = vector.shape_cast %46 : vector<1x8x256xf32> to vector<8x256xf32>
      %48 = arith.addf %45, %47 : vector<8x256xf32>
      %c0_38 = arith.constant 0 : index
      %c0_39 = arith.constant 0 : index
      %c0_40 = arith.constant 0 : index
      %49 = vector.load %arg9[%c0_38, %c0_39, %c0_40] : memref<1x8x256xf32, #tpu.memory_space<vmem>>, vector<1x8x256xf32>
      %50 = vector.shape_cast %49 : vector<1x8x256xf32> to vector<8x256xf32>
      %51 = vector.shape_cast %48 : vector<8x256xf32> to vector<1x8x256xf32>
      tpu.vector_store %arg9[%c0_38, %c0_39, %c0_40], %51 {strides = array<i32>} : memref<1x8x256xf32, #tpu.memory_space<vmem>>, vector<1x8x256xf32>,
    } else {
    }
    return
  }
  func.func @transform_0(%arg0: i32, %arg1: i32, %arg2: i32) -> (i32, i32, i32) {
    %c0_i32 = arith.constant 0 : i32
    %c0_i32_0 = arith.constant 0 : i32
    return %arg0, %c0_i32, %arg1 : i32, i32, i32
  }
  func.func @transform_1(%arg0: i32, %arg1: i32, %arg2: i32) -> (i32, i32, i32) {
    %c0_i32 = arith.constant 0 : i32
    %c0_i32_0 = arith.constant 0 : i32
    return %arg0, %c0_i32, %arg2 : i32, i32, i32
  }
  func.func @transform_2(%arg0: i32, %arg1: i32, %arg2: i32) -> (i32, i32, i32) {
    %c0_i32 = arith.constant 0 : i32
    %c0_i32_0 = arith.constant 0 : i32
    return %arg0, %c0_i32, %arg2 : i32, i32, i32
  }
  func.func @transform_3(%arg0: i32, %arg1: i32, %arg2: i32) -> (i32, i32) {
    %c0_i32 = arith.constant 0 : i32
    %c0_i32_0 = arith.constant 0 : i32
    %c0_i32_1 = arith.constant 0 : i32
    return %c0_i32, %c0_i32_0 : i32, i32
  }
  func.func @transform_4(%arg0: i32, %arg1: i32, %arg2: i32) -> (i32, i32) {
    %c0_i32 = arith.constant 0 : i32
    %c0_i32_0 = arith.constant 0 : i32
    %c0_i32_1 = arith.constant 0 : i32
    return %c0_i32, %c0_i32_0 : i32, i32
  }
  func.func @transform_5(%arg0: i32, %arg1: i32, %arg2: i32) -> (i32, i32, i32) {
    %c0_i32 = arith.constant 0 : i32
    %c0_i32_0 = arith.constant 0 : i32
    return %arg0, %c0_i32, %arg1 : i32, i32, i32
  }
  func.func @transform_6(%arg0: i32, %arg1: i32, %arg2: i32) -> (i32, i32, i32) {
    %c0_i32 = arith.constant 0 : i32
    %c0_i32_0 = arith.constant 0 : i32
    return %arg0, %c0_i32, %arg1 : i32, i32, i32
  }
}

</mosaic_0001>

<llo_original>
// kernel: tpu_custom_call.1
$region0: #{tpu_custom_call.1}
  #allocation0 [shape = 'u32[]', space=smem, size = 0x4, offset = 0x4, fixed_abs, tag = 'smem constant byte address 0x4 - core index']
  #allocation1 [shape = 'u32[144,128]{1,0:T(1,128)}', space=vmem, size = 0x12000, scoped, tag = 'internal scratch']
  #allocation2 [shape = 'f32[1,256]{1,0:T(1,128)}', space=vmem, size = 0x400, scoped, tag = 'scratch operand']
  #allocation3 [shape = 'f32[1,256]{1,0:T(1,128)}', space=vmem, size = 0x400, scoped, tag = 'scratch operand']
  #allocation4 [shape = 'f32[4,256]{1,0:T(4,128)}', space=vmem, size = 0x1000, scoped, tag = 'scratch operand']
  %s0 = inlined_call_operand.vmem [shape: bf16[2,4,256], index: 0, kind: input, shape index: {}]
  %s1 = inlined_call_operand.vmem [shape: bf16[2,4,128], index: 1, kind: input, shape index: {}]
  %s2 = inlined_call_operand.vmem [shape: bf16[2,4,128], index: 2, kind: input, shape index: {}]
  %s3 = inlined_call_operand.vmem [shape: f32[8,4], index: 3, kind: input, shape index: {}]
  %s4 = inlined_call_operand.vmem [shape: f32[8,1], index: 4, kind: input, shape index: {}]
  %s5 = inlined_call_operand.hbm [shape: f32[2,8,256], index: 5, kind: input, shape index: {}]
  %s6 = inlined_call_operand.hbm [shape: f32[2,8,256], index: 6, kind: output, shape index: {}]
  %s7 = sld [smem:[#allocation0]]
  $region69: #{tpu_custom_call.1} parent=0
    _
  %s9 = ssub.s32 1, %s7
  %s10 = scalar_select 0, %s9, %s7
  $region1: #{tpu_custom_call.1} parent=0
    #allocation5 [shape = 'u8[16384]{0}', space=vmem, size = 0x4000, scoped, tag = 'input window, operand 5']
    #allocation6 [shape = 's32[2]{0}', space=sflag, size = 0x8, scoped, tag = 'scoped memory for tpu_custom_call.1']
    #allocation7 [shape = 's32[2]{0}', space=sflag, size = 0x8, scoped, tag = 'scoped memory for tpu_custom_call.1']
    #allocation8 [shape = 'u8[16384]{0}', space=vmem, size = 0x4000, scoped, tag = 'output window, operand 0']
    %11 = vsyncpa [#allocation6], 0
    %s12 = scalar_lea.sflag [#allocation6], 1
    %13 = vsyncpa %s12, 0
    %14 = vsyncpa [#allocation7], 0
    %s15 = scalar_lea.sflag [#allocation7], 1
    %16 = vsyncpa %s15, 0
    loop: start=0, step=1, limit=4
    $region2: #{tpu_custom_call.1} parent=1 // loop_pre_header
      _
    $region3: #{tpu_custom_call.1} parent=1 // loop_header
      %s18 = sphi 0, %s22
      %p19 = scmp.ge.s32.totalorder %s18, 4
      %s25 = sphi 0, %s44
      %s26 = sphi 0, %s40
      %s27 = sphi 0, %s36
      %s28 = sphi 0, %s25
      %s29 = sphi 0, %s26
      %s30 = sphi 0, %s27
      %s31 = sphi 0, %s28
      %s32 = sphi 0, %s29
      %s33 = sphi 0, %s30
      %s49 = sphi 0, %s51
      %s52 = sphi 0, %s49
      %s53 = sphi 0, %s52
      %s69 = sphi 0, %s53
      %s77 = sphi 0, %s79
      %s80 = sphi 0, %s77
      %s81 = sphi 0, %s80
      %s97 = sphi 0, %s81
      %s105 = sphi 0, %s107
      %s108 = sphi 0, %s105
      %s109 = sphi 0, %s108
      %s125 = sphi 0, %s109
      %s129 = sphi 0, %s129
      %s131 = sphi 0, %s129
      %s132 = sphi 0, %s131
      %s146 = sphi 0, %s132
      %s150 = sphi 0, %s150
      %s152 = sphi 0, %s150
      %s153 = sphi 0, %s152
      %s167 = sphi 0, %s153
      %s175 = sphi 0, %s177
      %s178 = sphi 0, %s175
      %s179 = sphi 0, %s178
      %s195 = sphi 0, %s179
      %s203 = sphi 0, %s205
      %s206 = sphi 0, %s203
      %s207 = sphi 0, %s206
      %s223 = sphi 0, %s207
    $region4: #{tpu_custom_call.1} parent=1 // loop_header_branch
      %21 = sbr.rel (%p19) target = $region8
    $region5: #{tpu_custom_call.1} parent=1 // loop_body
      %s23 = ssub.s32 %s18, 1
      %s24 = ssub.s32 %s18, 2
      %s34 = sadd.s32 1, %s27
      %p35 = scmp.ge.s32.totalorder %s34, 1
      %s36 = scalar_select %p35, 0, %s34
      %s37 = sadd.s32 1, %s26
      %s38 = scalar_select %p35, %s37, %s26
      %p39 = scmp.ge.s32.totalorder %s38, 1
      %s40 = scalar_select %p39, 0, %s38
      %s41 = sadd.s32 1, %s25
      %s42 = scalar_select %p39, %s41, %s25
      %p43 = scmp.ge.s32.totalorder %s42, 2
      %s44 = scalar_select %p43, 0, %s42
      %s45 = ssub.s32 %s25, %s44
      %s46 = ssub.s32 %s26, %s40
      %s47 = sor.u32 %s45, %s46
      %p48 = scmp.eq.s32.totalorder %s47, 0
      %s50 = sadd.s32 %s49, 1
      %s51 = scalar_select %p48, %s49, %s50
      %p54 = pneg %p48
      %p55 = scmp.eq.s32.totalorder %s18, 1
      %p56 = por %p54, %p55
      %p57 = scmp.ne.s32.totalorder %s49, %s52
      %p58 = scmp.eq.s32.totalorder %s18, 0
      %p59 = por %p57, %p58
      %p60 = scmp.ne.s32.totalorder %s49, %s52
      %p61 = scmp.eq.s32.totalorder %s23, 1
      %p62 = por %p60, %p61
      %p63 = scmp.ne.s32.totalorder %s52, %s53
      %p64 = scmp.eq.s32.totalorder %s23, 0
      %p65 = por %p63, %p64
      %p66 = scmp.ne.s32.totalorder %s52, %s53
      %p67 = scmp.eq.s32.totalorder %s24, 1
      %p68 = por %p66, %p67
      %p70 = scmp.ne.s32.totalorder %s53, %s69
      %p71 = scmp.eq.s32.totalorder %s24, 0
      %p72 = por %p70, %p71
      %s73 = ssub.s32 %s25, %s44
      %s74 = ssub.s32 %s27, %s36
      %s75 = sor.u32 %s73, %s74
      %p76 = scmp.eq.s32.totalorder %s75, 0
      %s78 = sadd.s32 %s77, 1
      %s79 = scalar_select %p76, %s77, %s78
      %p82 = pneg %p76
      %p83 = scmp.eq.s32.totalorder %s18, 1
      %p84 = por %p82, %p83
      %p85 = scmp.ne.s32.totalorder %s77, %s80
      %p86 = scmp.eq.s32.totalorder %s18, 0
      %p87 = por %p85, %p86
      %p88 = scmp.ne.s32.totalorder %s77, %s80
      %p89 = scmp.eq.s32.totalorder %s23, 1
      %p90 = por %p88, %p89
      %p91 = scmp.ne.s32.totalorder %s80, %s81
      %p92 = scmp.eq.s32.totalorder %s23, 0
      %p93 = por %p91, %p92
      %p94 = scmp.ne.s32.totalorder %s80, %s81
      %p95 = scmp.eq.s32.totalorder %s24, 1
      %p96 = por %p94, %p95
      %p98 = scmp.ne.s32.totalorder %s81, %s97
      %p99 = scmp.eq.s32.totalorder %s24, 0
      %p100 = por %p98, %p99
      %s101 = ssub.s32 %s25, %s44
      %s102 = ssub.s32 %s27, %s36
      %s103 = sor.u32 %s101, %s102
      %p104 = scmp.eq.s32.totalorder %s103, 0
      %s106 = sadd.s32 %s105, 1
      %s107 = scalar_select %p104, %s105, %s106
      %p110 = pneg %p104
      %p111 = scmp.eq.s32.totalorder %s18, 1
      %p112 = por %p110, %p111
      %p113 = scmp.ne.s32.totalorder %s105, %s108
      %p114 = scmp.eq.s32.totalorder %s18, 0
      %p115 = por %p113, %p114
      %p116 = scmp.ne.s32.totalorder %s105, %s108
      %p117 = scmp.eq.s32.totalorder %s23, 1
      %p118 = por %p116, %p117
      %p119 = scmp.ne.s32.totalorder %s108, %s109
      %p120 = scmp.eq.s32.totalorder %s23, 0
      %p121 = por %p119, %p120
      %p122 = scmp.ne.s32.totalorder %s108, %s109
      %p123 = scmp.eq.s32.totalorder %s24, 1
      %p124 = por %p122, %p123
      %p126 = scmp.ne.s32.totalorder %s109, %s125
      %p127 = scmp.eq.s32.totalorder %s24, 0
      %p128 = por %p126, %p127
      %s130 = sadd.s32 %s129, 1
      %p133 = scmp.eq.s32.totalorder %s18, 1
      %p134 = scmp.ne.s32.totalorder %s129, %s131
      %p135 = scmp.eq.s32.totalorder %s18, 0
      %p136 = por %p134, %p135
      %p137 = scmp.ne.s32.totalorder %s129, %s131
      %p138 = scmp.eq.s32.totalorder %s23, 1
      %p139 = por %p137, %p138
      %p140 = scmp.ne.s32.totalorder %s131, %s132
      %p141 = scmp.eq.s32.totalorder %s23, 0
      %p142 = por %p140, %p141
      %p143 = scmp.ne.s32.totalorder %s131, %s132
      %p144 = scmp.eq.s32.totalorder %s24, 1
      %p145 = por %p143, %p144
      %p147 = scmp.ne.s32.totalorder %s132, %s146
      %p148 = scmp.eq.s32.totalorder %s24, 0
      %p149 = por %p147, %p148
      %s151 = sadd.s32 %s150, 1
      %p154 = scmp.eq.s32.totalorder %s18, 1
      %p155 = scmp.ne.s32.totalorder %s150, %s152
      %p156 = scmp.eq.s32.totalorder %s18, 0
      %p157 = por %p155, %p156
      %p158 = scmp.ne.s32.totalorder %s150, %s152
      %p159 = scmp.eq.s32.totalorder %s23, 1
      %p160 = por %p158, %p159
      %p161 = scmp.ne.s32.totalorder %s152, %s153
      %p162 = scmp.eq.s32.totalorder %s23, 0
      %p163 = por %p161, %p162
      %p164 = scmp.ne.s32.totalorder %s152, %s153
      %p165 = scmp.eq.s32.totalorder %s24, 1
      %p166 = por %p164, %p165
      %p168 = scmp.ne.s32.totalorder %s153, %s167
      %p169 = scmp.eq.s32.totalorder %s24, 0
      %p170 = por %p168, %p169
      %s171 = ssub.s32 %s25, %s44
      %s172 = ssub.s32 %s26, %s40
      %s173 = sor.u32 %s171, %s172
      %p174 = scmp.eq.s32.totalorder %s173, 0
      %s176 = sadd.s32 %s175, 1
      %s177 = scalar_select %p174, %s175, %s176
      %p180 = pneg %p174
      %p181 = scmp.eq.s32.totalorder %s18, 1
      %p182 = por %p180, %p181
      %p183 = scmp.ne.s32.totalorder %s175, %s178
      %p184 = scmp.eq.s32.totalorder %s18, 0
      %p185 = por %p183, %p184
      %p186 = scmp.ne.s32.totalorder %s175, %s178
      %p187 = scmp.eq.s32.totalorder %s23, 1
      %p188 = por %p186, %p187
      %p189 = scmp.ne.s32.totalorder %s178, %s179
      %p190 = scmp.eq.s32.totalorder %s23, 0
      %p191 = por %p189, %p190
      %p192 = scmp.ne.s32.totalorder %s178, %s179
      %p193 = scmp.eq.s32.totalorder %s24, 1
      %p194 = por %p192, %p193
      %p196 = scmp.ne.s32.totalorder %s179, %s195
      %p197 = scmp.eq.s32.totalorder %s24, 0
      %p198 = por %p196, %p197
      %s199 = ssub.s32 %s25, %s44
      %s200 = ssub.s32 %s26, %s40
      %s201 = sor.u32 %s199, %s200
      %p202 = scmp.eq.s32.totalorder %s201, 0
      %s204 = sadd.s32 %s203, 1
      %s205 = scalar_select %p202, %s203, %s204
      %p208 = pneg %p202
      %p209 = scmp.eq.s32.totalorder %s18, 1
      %p210 = por %p208, %p209
      %p211 = scmp.ne.s32.totalorder %s203, %s206
      %p212 = scmp.eq.s32.totalorder %s18, 0
      %p213 = por %p211, %p212
      %p214 = scmp.ne.s32.totalorder %s203, %s206
      %p215 = scmp.eq.s32.totalorder %s23, 1
      %p216 = por %p214, %p215
      %p217 = scmp.ne.s32.totalorder %s206, %s207
      %p218 = scmp.eq.s32.totalorder %s23, 0
      %p219 = por %p217, %p218
      %p220 = scmp.ne.s32.totalorder %s206, %s207
      %p221 = scmp.eq.s32.totalorder %s24, 1
      %p222 = por %p220, %p221
      %p224 = scmp.ne.s32.totalorder %s207, %s223
      %p225 = scmp.eq.s32.totalorder %s24, 0
      %p226 = por %p224, %p225
      %p227 = scmp.le.s32.totalorder 1, %s18
      %p228 = scmp.lt.s32.totalorder %s18, 3
      %p229 = pnand %p227, %p228
      %p230 = pneg %p229
      // Predicated region
      $region9: #{tpu_custom_call.1} parent=5 // pred_check
        _
      $region10: #{tpu_custom_call.1} parent=5 // pred_check_branch
        %232 = sbr.rel (%p229) target = $region12
      $region11: #{tpu_custom_call.1} parent=5 // pred_region
        %s233 = ssub.s32 %s18, 1
        // Predicated region
        $region13: #{tpu_custom_call.1} parent=11 // pred_check
          %p234 = pneg %p142
        $region14: #{tpu_custom_call.1} parent=11 // pred_check_branch
          %236 = sbr.rel (%p234) target = $region16
        $region15: #{tpu_custom_call.1} parent=11 // pred_region
          _
        $region16: #{tpu_custom_call.1} parent=11 // pred_fallthru
          _
        // Predicated region
        $region17: #{tpu_custom_call.1} parent=11 // pred_check
          %p237 = pneg %p163
        $region18: #{tpu_custom_call.1} parent=11 // pred_check_branch
          %239 = sbr.rel (%p237) target = $region20
        $region19: #{tpu_custom_call.1} parent=11 // pred_region
          _
        $region20: #{tpu_custom_call.1} parent=11 // pred_fallthru
          _
      $region12: #{tpu_custom_call.1} parent=5 // pred_fallthru
        _
      %p240 = scmp.lt.s32.totalorder %s18, 2
      // Predicated region
      $region21: #{tpu_custom_call.1} parent=5 // pred_check
        %p241 = pneg %p240
      $region22: #{tpu_custom_call.1} parent=5 // pred_check_branch
        %243 = sbr.rel (%p241) target = $region24
      $region23: #{tpu_custom_call.1} parent=5 // pred_region
        // Predicated region
        $region25: #{tpu_custom_call.1} parent=23 // pred_check
          %p244 = pneg %p59
        $region26: #{tpu_custom_call.1} parent=23 // pred_check_branch
          %246 = sbr.rel (%p244) target = $region28
        $region27: #{tpu_custom_call.1} parent=23 // pred_region
          %s247 = smul.u32 2, %s26
          %p248 = scmp.lt.s32.totalorder %s25, 1
          %s249 = scalar_select %p248, %s25, 1
          %p250 = scmp.lt.s32.totalorder %s247, 1
          %s251 = scalar_select %p250, %s247, 1
          %s252 = smul.addr %s249, 2
          %s253 = sadd.s32 %s251, %s252
          %s254 = smul.addr %s253, 2
          %s255 = scalar_lea.vmem %s0, %s254
          %s256 = smul.u32 2, %s26
        $region28: #{tpu_custom_call.1} parent=23 // pred_fallthru
          _
        // Predicated region
        $region29: #{tpu_custom_call.1} parent=23 // pred_check
          %p257 = pneg %p87
        $region30: #{tpu_custom_call.1} parent=23 // pred_check_branch
          %259 = sbr.rel (%p257) target = $region32
        $region31: #{tpu_custom_call.1} parent=23 // pred_region
          %p260 = scmp.lt.s32.totalorder %s25, 1
          %s261 = scalar_select %p260, %s25, 1
          %p262 = scmp.lt.s32.totalorder %s27, 0
          %s263 = scalar_select %p262, %s27, 0
          %s264 = sadd.s32 %s263, %s261
          %s265 = smul.addr %s264, 2
          %s266 = scalar_lea.vmem %s1, %s265
        $region32: #{tpu_custom_call.1} parent=23 // pred_fallthru
          _
        // Predicated region
        $region33: #{tpu_custom_call.1} parent=23 // pred_check
          %p267 = pneg %p115
        $region34: #{tpu_custom_call.1} parent=23 // pred_check_branch
          %269 = sbr.rel (%p267) target = $region36
        $region35: #{tpu_custom_call.1} parent=23 // pred_region
          %p270 = scmp.lt.s32.totalorder %s25, 1
          %s271 = scalar_select %p270, %s25, 1
          %p272 = scmp.lt.s32.totalorder %s27, 0
          %s273 = scalar_select %p272, %s27, 0
          %s274 = sadd.s32 %s273, %s271
          %s275 = smul.addr %s274, 2
          %s276 = scalar_lea.vmem %s2, %s275
        $region36: #{tpu_custom_call.1} parent=23 // pred_fallthru
          _
        // Predicated region
        $region37: #{tpu_custom_call.1} parent=23 // pred_check
          %p277 = pneg %p185
        $region38: #{tpu_custom_call.1} parent=23 // pred_check_branch
          %279 = sbr.rel (%p277) target = $region40
        $region39: #{tpu_custom_call.1} parent=23 // pred_region
          %s280 = sand.u32 %s175, 1
          %s281 = scalar_lea.sflag [#allocation6], %s280
          %s282 = sand.u32 %s175, 1
          %s283 = smul.addr %s282, 16
          %s284 = scalar_lea.vmem [#allocation5], %s283
          %s285 = smul.u32 2, %s26
          %s287 = ssub.s32 256, 256
          %288 = vsyncadd %s281, %s287
          %s289 = smul.addr %s25, 2
          %s290 = sadd.s32 %s285, %s289
          %s291 = smul.addr %s290, 128
          %s292 = scalar_lea.hbm %s5, %s291
          %s294 = sshll.u32 %s284, 4
          %s295 = int_to_ptr.vmem [resolvable:$true] %s294
          %297 = dma.hbm_to_vmem [thread:$0]  %s292, 256, %s295, %s281
        $region40: #{tpu_custom_call.1} parent=23 // pred_fallthru
          _
      $region24: #{tpu_custom_call.1} parent=5 // pred_fallthru
        _
      %p298 = scmp.le.s32.totalorder 1, %s18
      %p299 = scmp.lt.s32.totalorder %s18, 3
      %p300 = pnand %p298, %p299
      %p301 = pneg %p300
      // Predicated region
      $region41: #{tpu_custom_call.1} parent=5 // pred_check
        _
      $region42: #{tpu_custom_call.1} parent=5 // pred_check_branch
        %303 = sbr.rel (%p300) target = $region44
      $region43: #{tpu_custom_call.1} parent=5 // pred_region
        %s304 = ssub.s32 %s18, 1
        %s305 = sand.u32 %s178, 1
        %s306 = scalar_lea.sflag [#allocation6], %s305
        %s307 = sand.u32 %s178, 1
        %s308 = smul.addr %s307, 16
        %s309 = scalar_lea.vmem [#allocation5], %s308
        // Predicated region
        $region45: #{tpu_custom_call.1} parent=43 // pred_check
          %p310 = pneg %p191
        $region46: #{tpu_custom_call.1} parent=43 // pred_check_branch
          %312 = sbr.rel (%p310) target = $region48
        $region47: #{tpu_custom_call.1} parent=43 // pred_region
          %313 = dma.done %s306, 256
        $region48: #{tpu_custom_call.1} parent=43 // pred_fallthru
          _
        %s314 = smul.u32 2, %s29
        %p315 = scmp.lt.s32.totalorder %s28, 1
        %s316 = scalar_select %p315, %s28, 1
        %p317 = scmp.lt.s32.totalorder %s314, 1
        %s318 = scalar_select %p317, %s314, 1
        %s319 = smul.addr %s316, 2
        %s320 = sadd.s32 %s318, %s319
        %s321 = smul.addr %s320, 2
        %s322 = scalar_lea.vmem %s0, %s321
        %p323 = pneg %p65
        %p324 = pneg %p62
        %p325 = scmp.lt.s32.totalorder %s28, 1
        %s326 = scalar_select %p325, %s28, 1
        %p327 = scmp.lt.s32.totalorder %s30, 0
        %s328 = scalar_select %p327, %s30, 0
        %s329 = sadd.s32 %s328, %s326
        %s330 = smul.addr %s329, 2
        %s331 = scalar_lea.vmem %s1, %s330
        %p332 = pneg %p93
        %p333 = pneg %p90
        %p334 = scmp.lt.s32.totalorder %s28, 1
        %s335 = scalar_select %p334, %s28, 1
        %p336 = scmp.lt.s32.totalorder %s30, 0
        %s337 = scalar_select %p336, %s30, 0
        %s338 = sadd.s32 %s337, %s335
        %s339 = smul.addr %s338, 2
        %s340 = scalar_lea.vmem %s2, %s339
        %p341 = pneg %p121
        %p342 = pneg %p118
        %p343 = pneg %p142
        %p344 = pneg %p139
        %p345 = pneg %p163
        %p346 = pneg %p160
        %s347 = sand.u32 %s178, 1
        %s348 = scalar_lea.sflag [#allocation6], %s347
        %s349 = sand.u32 %s178, 1
        %s350 = smul.addr %s349, 16
        %s351 = scalar_lea.vmem [#allocation5], %s350
        %p352 = pneg %p191
        %p353 = pneg %p188
        %p354 = pneg %p219
        %p355 = pneg %p216
        %s356 = sand.u32 %s206, 1
        %s357 = scalar_lea.sflag [#allocation7], %s356
        %s358 = sand.u32 %s206, 1
        %s359 = smul.addr %s358, 16
        %s360 = scalar_lea.vmem [#allocation8], %s359
        %s361 = smul.u32 2, %s29
        %p362 = scmp.lt.s32.totalorder %s28, 1
        %s363 = scalar_select %p362, %s28, 1
        %p364 = scmp.lt.s32.totalorder %s361, 1
        %s365 = scalar_select %p364, %s361, 1
        %s366 = smul.addr %s363, 2
        %s367 = sadd.s32 %s365, %s366
        %s368 = smul.addr %s367, 2
        %s369 = scalar_lea.vmem %s0, %s368
        %s370 = smul.u32 2, %s29
        %p371 = scmp.lt.s32.totalorder %s28, 1
        %s372 = scalar_select %p371, %s28, 1
        %p373 = scmp.lt.s32.totalorder %s30, 0
        %s374 = scalar_select %p373, %s30, 0
        %s375 = sadd.s32 %s374, %s372
        %s376 = smul.addr %s375, 2
        %s377 = scalar_lea.vmem %s1, %s376
        %p378 = scmp.lt.s32.totalorder %s28, 1
        %s379 = scalar_select %p378, %s28, 1
        %p380 = scmp.lt.s32.totalorder %s30, 0
        %s381 = scalar_select %p380, %s30, 0
        %s382 = sadd.s32 %s381, %s379
        %s383 = smul.addr %s382, 2
        %s384 = scalar_lea.vmem %s2, %s383
        %s385 = smul.u32 2, %s29
        %s386 = smul.u32 2, %s29
        %p388 = scmp.eq.s32.totalorder %s30, 0
        // Predicated region
        $region49: #{tpu_custom_call.1} parent=43 // pred_check
          %p389 = pneg %p388
        $region50: #{tpu_custom_call.1} parent=43 // pred_check_branch
          %391 = sbr.rel (%p389) target = $region52
        $region51: #{tpu_custom_call.1} parent=43 // pred_region
          %v392 = vlaneseq
          %vm393 = vcmp.ge.s32.totalorder %v392, 0
          %vm394 = vcmp.lt.s32.totalorder %v392, 256
          %vm395 = vmand %vm393, %vm394
          %396 = vst.msk [vmem:[#allocation2] sm:$0x3] %vm395, -inf
          %397 = vst.msk [vmem:[#allocation3] sm:$0x3] %vm395, 0.0
          %398 = vst [vmem:[#allocation4] sm:$0xff] 0.0
        $region52: #{tpu_custom_call.1} parent=43 // pred_fallthru
          _
        %v399 = vld [vmem:[%s377] sm:$0x3]
        %v400 = vld [vmem:[%s369] sm:$0xf]
        %401 = vxpose.xlu0.c.b16.start [1/8] %v399, 128
        %402 = vxpose.xlu0.c.b16.cont [2/8] 0, 128
        %403 = vxpose.xlu0.c.b16.cont [3/8] 0, 128
        %404 = vxpose.xlu0.c.b16.cont [4/8] 0, 128
        %405 = vxpose.xlu0.c.b16.cont [5/8] 0, 128
        %406 = vxpose.xlu0.c.b16.cont [6/8] 0, 128
        %407 = vxpose.xlu0.c.b16.cont [7/8] 0, 128
        %408 = vxpose.xlu0.c.b16.end [8/8] 0, 128
        %v409 = vpop.trf.xlu0
        %v410 = vpop.trf.xlu0
        %v411 = vpop.trf.xlu0
        %v412 = vpop.trf.xlu0
        %v413 = vpop.trf.xlu0
        %v414 = vpop.trf.xlu0
        %v415 = vpop.trf.xlu0
        %v416 = vpop.trf.xlu0
        %v419 = vunpack.c.l.s4 1983009808
        %v420 = vunpack.c.0.s8 %v419
        %v421 = vlaneseq
        %v422 = vshrl.u32 %v421, 7
        %v423 = vsub.s32 %v420, %v422
        %v424 = vrot.slane %v400, %v423
        %v425 = vcombine.high %v424, %v424
        %vm426 = vcmask 31744
        %v428 = vsel %vm426, %v409, 0
        %v431 = vsel %vm426, %v410, 0
        %v434 = vsel %vm426, %v411, 0
        %v437 = vsel %vm426, %v412, 0
        %v440 = vsel %vm426, %v413, 0
        %v443 = vsel %vm426, %v414, 0
        %v446 = vsel %vm426, %v415, 0
        %v449 = vsel %vm426, %v416, 0
        %vm451 = vcmask 1041408
        %v453 = vsel %vm451, %v424, 0
        %v456 = vsel %vm451, %v425, 0
        %458 = vmatprep.subr.bf16.mxu0 0
        %459 = vmatpush1.bf16.msra.mxu0 0
        %460 = vmatprep.subr.bf16.mxu0 0
        %461 = vmatpush1.bf16.msra.mxu0 0
        %462 = vmatprep.subr.bf16.mxu0 0
        %463 = vmatpush1.bf16.msra.mxu0 0
        %464 = vmatprep.subr.bf16.mxu0 0
        %465 = vmatpush1.bf16.msra.mxu0 0
        %466 = vmatprep.subr.bf16.mxu0 0
        %467 = vmatpush1.bf16.msra.mxu0 0
        %468 = vmatprep.subr.bf16.mxu0 0
        %469 = vmatpush1.bf16.msra.mxu0 0
        %470 = vmatprep.subr.bf16.mxu0 0
        %471 = vmatpush1.bf16.msra.mxu0 0
        %472 = vmatprep.subr.bf16.mxu0 %v456
        %473 = vmatpush1.bf16.msra.mxu0 %v453
        %474 = vmatprep.subr.bf16.mxu0 0
        %475 = vmatpush2.bf16.msra.mxu0 0
        %476 = vmatprep.subr.bf16.mxu0 0
        %477 = vmatpush2.bf16.msra.mxu0 0
        %478 = vmatprep.subr.bf16.mxu0 0
        %479 = vmatpush2.bf16.msra.mxu0 0
        %480 = vmatprep.subr.bf16.mxu0 0
        %481 = vmatpush2.bf16.msra.mxu0 0
        %482 = vmatprep.subr.bf16.mxu0 0
        %483 = vmatpush2.bf16.msra.mxu0 0
        %484 = vmatprep.subr.bf16.mxu0 0
        %485 = vmatpush2.bf16.msra.mxu0 0
        %486 = vmatprep.subr.bf16.mxu0 0
        %487 = vmatpush2.bf16.msra.mxu0 0
        %488 = vmatprep.subr.bf16.mxu0 0
        %489 = vmatpush2.bf16.msra.mxu0 0
        %490 = vmatprep.mubr.bf16.mxu0 0
        %491 = vmatmul.mubr.bf16.gmra.mxu0 %v428
        %v492 = vpop.f32.mrf.mxu0
        %v493 = vadd.f32 0.0, %v492
        %v494 = vpop.f32.mrf.mxu0
        %v495 = vadd.f32 0.0, %v494
        %v496 = vpop.f32.mrf.mxu0
        %v497 = vadd.f32 0.0, %v496
        %v498 = vpop.f32.mrf.mxu0
        %v499 = vadd.f32 0.0, %v498
        %500 = vmatprep.mubr.bf16.mxu0 0
        %501 = vmatmul.mubr.bf16.gmra.mxu0 %v431
        %v502 = vpop.f32.mrf.mxu0
        %v503 = vadd.f32 0.0, %v502
        %v504 = vpop.f32.mrf.mxu0
        %v505 = vadd.f32 0.0, %v504
        %v506 = vpop.f32.mrf.mxu0
        %v507 = vadd.f32 0.0, %v506
        %v508 = vpop.f32.mrf.mxu0
        %v509 = vadd.f32 0.0, %v508
        %510 = vmatprep.mubr.bf16.mxu0 0
        %511 = vmatmul.mubr.bf16.gmra.mxu0 %v434
        %v512 = vpop.f32.mrf.mxu0
        %v513 = vadd.f32 0.0, %v512
        %v514 = vpop.f32.mrf.mxu0
        %v515 = vadd.f32 0.0, %v514
        %v516 = vpop.f32.mrf.mxu0
        %v517 = vadd.f32 0.0, %v516
        %v518 = vpop.f32.mrf.mxu0
        %v519 = vadd.f32 0.0, %v518
        %520 = vmatprep.mubr.bf16.mxu0 0
        %521 = vmatmul.mubr.bf16.gmra.mxu0 %v437
        %v522 = vpop.f32.mrf.mxu0
        %v523 = vadd.f32 0.0, %v522
        %v524 = vpop.f32.mrf.mxu0
        %v525 = vadd.f32 0.0, %v524
        %v526 = vpop.f32.mrf.mxu0
        %v527 = vadd.f32 0.0, %v526
        %v528 = vpop.f32.mrf.mxu0
        %v529 = vadd.f32 0.0, %v528
        %530 = vmatprep.mubr.bf16.mxu0 0
        %531 = vmatmul.mubr.bf16.gmra.mxu0 %v440
        %v532 = vpop.f32.mrf.mxu0
        %v533 = vadd.f32 0.0, %v532
        %v534 = vpop.f32.mrf.mxu0
        %v535 = vadd.f32 0.0, %v534
        %v536 = vpop.f32.mrf.mxu0
        %v537 = vadd.f32 0.0, %v536
        %v538 = vpop.f32.mrf.mxu0
        %v539 = vadd.f32 0.0, %v538
        %540 = vmatprep.mubr.bf16.mxu0 0
        %541 = vmatmul.mubr.bf16.gmra.mxu0 %v443
        %v542 = vpop.f32.mrf.mxu0
        %v543 = vadd.f32 0.0, %v542
        %v544 = vpop.f32.mrf.mxu0
        %v545 = vadd.f32 0.0, %v544
        %v546 = vpop.f32.mrf.mxu0
        %v547 = vadd.f32 0.0, %v546
        %v548 = vpop.f32.mrf.mxu0
        %v549 = vadd.f32 0.0, %v548
        %550 = vmatprep.mubr.bf16.mxu0 0
        %551 = vmatmul.mubr.bf16.gmra.mxu0 %v446
        %v552 = vpop.f32.mrf.mxu0
        %v553 = vadd.f32 0.0, %v552
        %v554 = vpop.f32.mrf.mxu0
        %v555 = vadd.f32 0.0, %v554
        %v556 = vpop.f32.mrf.mxu0
        %v557 = vadd.f32 0.0, %v556
        %v558 = vpop.f32.mrf.mxu0
        %v559 = vadd.f32 0.0, %v558
        %560 = vmatprep.mubr.bf16.mxu0 0
        %561 = vmatmul.mubr.bf16.gmra.mxu0 %v449
        %v562 = vpop.f32.mrf.mxu0
        %v563 = vadd.f32 0.0, %v562
        %v564 = vpop.f32.mrf.mxu0
        %v565 = vadd.f32 0.0, %v564
        %v566 = vpop.f32.mrf.mxu0
        %v567 = vadd.f32 0.0, %v566
        %v568 = vpop.f32.mrf.mxu0
        %v569 = vadd.f32 0.0, %v568
        %570 = vdwg.mxu0
        %v571 = vld [vmem:[#allocation2] sm:$0x3]
        %v572 = vmax.f32 %v493, %v503
        %v573 = vmax.f32 %v497, %v507
        %v574 = vmax.f32 %v572, %v513
        %v575 = vmax.f32 %v573, %v517
        %v576 = vmax.f32 %v574, %v523
        %v577 = vmax.f32 %v575, %v527
        %v578 = vmax.f32 %v576, %v533
        %v579 = vmax.f32 %v577, %v537
        %v580 = vmax.f32 %v578, %v543
        %v581 = vmax.f32 %v579, %v547
        %v582 = vmax.f32 %v580, %v553
        %v583 = vmax.f32 %v581, %v557
        %v584 = vmax.f32 %v582, %v563
        %v585 = vmax.f32 %v583, %v567
        %v586 = vmax.f32 %v584, %v585
        %v587 = vrot.slane %v586, 4
        %v588 = vmax.f32 %v586, %v587
        %v589 = vrot.slane %v588, 2
        %v590 = vmax.f32 %v588, %v589
        %v591 = vrot.slane %v590, 1
        %v592 = vmax.f32 %v590, %v591
        %v593 = vmax.f32 %v495, %v505
        %v594 = vmax.f32 %v499, %v509
        %v595 = vmax.f32 %v593, %v515
        %v596 = vmax.f32 %v594, %v519
        %v597 = vmax.f32 %v595, %v525
        %v598 = vmax.f32 %v596, %v529
        %v599 = vmax.f32 %v597, %v535
        %v600 = vmax.f32 %v598, %v539
        %v601 = vmax.f32 %v599, %v545
        %v602 = vmax.f32 %v600, %v549
        %v603 = vmax.f32 %v601, %v555
        %v604 = vmax.f32 %v602, %v559
        %v605 = vmax.f32 %v603, %v565
        %v606 = vmax.f32 %v604, %v569
        %v607 = vmax.f32 %v605, %v606
        %v608 = vrot.slane %v607, 4
        %v609 = vmax.f32 %v607, %v608
        %v610 = vrot.slane %v609, 2
        %v611 = vmax.f32 %v609, %v610
        %v612 = vrot.slane %v611, 1
        %v613 = vmax.f32 %v611, %v612
        %v616 = vcombine.low %v592, %v613
        %v618 = vunpack.c.l.s4 1966171168
        %v619 = vunpack.c.0.s8 %v618
        %v620 = vlaneseq
        %v621 = vshrl.u32 %v620, 7
        %v622 = vsub.s32 %v619, %v621
        %v623 = vrot.slane %v616, %v622
        %v625 = vunpack.c.l.s4 1966171168
        %v626 = vunpack.c.0.s8 %v625
        %v627 = vlaneseq
        %v628 = vshrl.u32 %v627, 7
        %v629 = vsub.s32 %v626, %v628
        %v630 = vrot.slane %v623, %v629
        %v632 = vmax.f32 %v571, %v630
        %v633 = vsub.f32 %v571, %v632
        %v634 = vmul.f32 %v633, 1.442695
        %v635 = vpow.pop %v634
        %v637 = vlaneseq
        %v638 = vshrl.u32 %v637, 7
        %v639 = vsub.s32 0, %v638
        %v640 = vrot.slane %v632, %v639
        %v641 = vlaneseq
        %v642 = vshrl.u32 %v641, 7
        %v643 = vsub.s32 1, %v642
        %v644 = vrot.slane %v632, %v643
        %v647 = vsub.f32 %v493, %v640
        %v648 = vsub.f32 %v495, %v644
        %v649 = vsub.f32 %v497, %v640
        %v650 = vsub.f32 %v499, %v644
        %v651 = vsub.f32 %v503, %v640
        %v652 = vsub.f32 %v505, %v644
        %v653 = vsub.f32 %v507, %v640
        %v654 = vsub.f32 %v509, %v644
        %v655 = vsub.f32 %v513, %v640
        %v656 = vsub.f32 %v515, %v644
        %v657 = vsub.f32 %v517, %v640
        %v658 = vsub.f32 %v519, %v644
        %v659 = vsub.f32 %v523, %v640
        %v660 = vsub.f32 %v525, %v644
        %v661 = vsub.f32 %v527, %v640
        %v662 = vsub.f32 %v529, %v644
        %v663 = vsub.f32 %v533, %v640
        %v664 = vsub.f32 %v535, %v644
        %v665 = vsub.f32 %v537, %v640
        %v666 = vsub.f32 %v539, %v644
        %v667 = vsub.f32 %v543, %v640
        %v668 = vsub.f32 %v545, %v644
        %v669 = vsub.f32 %v547, %v640
        %v670 = vsub.f32 %v549, %v644
        %v671 = vsub.f32 %v553, %v640
        %v672 = vsub.f32 %v555, %v644
        %v673 = vsub.f32 %v557, %v640
        %v674 = vsub.f32 %v559, %v644
        %v675 = vsub.f32 %v563, %v640
        %v676 = vsub.f32 %v565, %v644
        %v677 = vsub.f32 %v567, %v640
        %v678 = vsub.f32 %v569, %v644
        %v679 = vmul.f32 %v647, 1.442695
        %v680 = vpow.pop %v679
        %v681 = vmul.f32 %v648, 1.442695
        %v682 = vpow.pop %v681
        %v683 = vmul.f32 %v649, 1.442695
        %v684 = vpow.pop %v683
        %v685 = vmul.f32 %v650, 1.442695
        %v686 = vpow.pop %v685
        %v687 = vmul.f32 %v651, 1.442695
        %v688 = vpow.pop %v687
        %v689 = vmul.f32 %v652, 1.442695
        %v690 = vpow.pop %v689
        %v691 = vmul.f32 %v653, 1.442695
        %v692 = vpow.pop %v691
        %v693 = vmul.f32 %v654, 1.442695
        %v694 = vpow.pop %v693
        %v695 = vmul.f32 %v655, 1.442695
        %v696 = vpow.pop %v695
        %v697 = vmul.f32 %v656, 1.442695
        %v698 = vpow.pop %v697
        %v699 = vmul.f32 %v657, 1.442695
        %v700 = vpow.pop %v699
        %v701 = vmul.f32 %v658, 1.442695
        %v702 = vpow.pop %v701
        %v703 = vmul.f32 %v659, 1.442695
        %v704 = vpow.pop %v703
        %v705 = vmul.f32 %v660, 1.442695
        %v706 = vpow.pop %v705
        %v707 = vmul.f32 %v661, 1.442695
        %v708 = vpow.pop %v707
        %v709 = vmul.f32 %v662, 1.442695
        %v710 = vpow.pop %v709
        %v711 = vmul.f32 %v663, 1.442695
        %v712 = vpow.pop %v711
        %v713 = vmul.f32 %v664, 1.442695
        %v714 = vpow.pop %v713
        %v715 = vmul.f32 %v665, 1.442695
        %v716 = vpow.pop %v715
        %v717 = vmul.f32 %v666, 1.442695
        %v718 = vpow.pop %v717
        %v719 = vmul.f32 %v667, 1.442695
        %v720 = vpow.pop %v719
        %v721 = vmul.f32 %v668, 1.442695
        %v722 = vpow.pop %v721
        %v723 = vmul.f32 %v669, 1.442695
        %v724 = vpow.pop %v723
        %v725 = vmul.f32 %v670, 1.442695
        %v726 = vpow.pop %v725
        %v727 = vmul.f32 %v671, 1.442695
        %v728 = vpow.pop %v727
        %v729 = vmul.f32 %v672, 1.442695
        %v730 = vpow.pop %v729
        %v731 = vmul.f32 %v673, 1.442695
        %v732 = vpow.pop %v731
        %v733 = vmul.f32 %v674, 1.442695
        %v734 = vpow.pop %v733
        %v735 = vmul.f32 %v675, 1.442695
        %v736 = vpow.pop %v735
        %v737 = vmul.f32 %v676, 1.442695
        %v738 = vpow.pop %v737
        %v739 = vmul.f32 %v677, 1.442695
        %v740 = vpow.pop %v739
        %v741 = vmul.f32 %v678, 1.442695
        %v742 = vpow.pop %v741
        %v743 = vld [vmem:[#allocation3] sm:$0x3]
        %v744 = vmul.f32 %v635, %v743
        %v745 = vadd.f32 %v680, %v684
        %v746 = vadd.f32 %v745, %v688
        %v747 = vadd.f32 %v746, %v692
        %v748 = vadd.f32 %v747, %v696
        %v749 = vadd.f32 %v748, %v700
        %v750 = vadd.f32 %v749, %v704
        %v751 = vadd.f32 %v750, %v708
        %v752 = vadd.f32 %v751, %v712
        %v753 = vadd.f32 %v752, %v716
        %v754 = vadd.f32 %v753, %v720
        %v755 = vadd.f32 %v754, %v724
        %v756 = vadd.f32 %v755, %v728
        %v757 = vadd.f32 %v756, %v732
        %v758 = vadd.f32 %v757, %v736
        %v759 = vadd.f32 %v758, %v740
        %v760 = vrot.slane %v759, 4
        %v761 = vadd.f32 %v759, %v760
        %v762 = vrot.slane %v761, 2
        %v763 = vadd.f32 %v761, %v762
        %v764 = vrot.slane %v763, 1
        %v765 = vadd.f32 %v763, %v764
        %v766 = vadd.f32 %v682, %v686
        %v767 = vadd.f32 %v766, %v690
        %v768 = vadd.f32 %v767, %v694
        %v769 = vadd.f32 %v768, %v698
        %v770 = vadd.f32 %v769, %v702
        %v771 = vadd.f32 %v770, %v706
        %v772 = vadd.f32 %v771, %v710
        %v773 = vadd.f32 %v772, %v714
        %v774 = vadd.f32 %v773, %v718
        %v775 = vadd.f32 %v774, %v722
        %v776 = vadd.f32 %v775, %v726
        %v777 = vadd.f32 %v776, %v730
        %v778 = vadd.f32 %v777, %v734
        %v779 = vadd.f32 %v778, %v738
        %v780 = vadd.f32 %v779, %v742
        %v781 = vrot.slane %v780, 4
        %v782 = vadd.f32 %v780, %v781
        %v783 = vrot.slane %v782, 2
        %v784 = vadd.f32 %v782, %v783
        %v785 = vrot.slane %v784, 1
        %v786 = vadd.f32 %v784, %v785
        %v789 = vcombine.low %v765, %v786
        %v791 = vunpack.c.l.s4 1966171168
        %v792 = vunpack.c.0.s8 %v791
        %v793 = vlaneseq
        %v794 = vshrl.u32 %v793, 7
        %v795 = vsub.s32 %v792, %v794
        %v796 = vrot.slane %v789, %v795
        %v798 = vunpack.c.l.s4 1966171168
        %v799 = vunpack.c.0.s8 %v798
        %v800 = vlaneseq
        %v801 = vshrl.u32 %v800, 7
        %v802 = vsub.s32 %v799, %v801
        %v803 = vrot.slane %v796, %v802
        %v805 = vadd.f32 %v744, %v803
        %v806 = vlaneseq
        %vm807 = vcmp.ge.s32.totalorder %v806, 0
        %vm808 = vcmp.lt.s32.totalorder %v806, 256
        %vm809 = vmand %vm807, %vm808
        %810 = vst.msk [vmem:[#allocation3] sm:$0x3] %vm809, %v805
        %v811 = vld [vmem:[#allocation4] sm:$0xff]
        %v813 = vlaneseq
        %v814 = vshrl.u32 %v813, 7
        %v815 = vsub.s32 0, %v814
        %v816 = vrot.slane %v635, %v815
        %v817 = vlaneseq
        %v818 = vshrl.u32 %v817, 7
        %v819 = vsub.s32 1, %v818
        %v820 = vrot.slane %v635, %v819
        %v824 = vcombine.high %v811, %v811
        %v826 = vmul.f32 %v816, %v811
        %v827 = vmul.f32 %v820, %v824
        %v828 = vld [vmem:[%s384] sm:$0x3]
        %v829 = vpack.c.bf16 %v684, %v680
        %v830 = vpack.c.bf16 %v686, %v682
        %v831 = vpack.c.bf16 %v692, %v688
        %v832 = vpack.c.bf16 %v694, %v690
        %v833 = vpack.c.bf16 %v700, %v696
        %v834 = vpack.c.bf16 %v702, %v698
        %v835 = vpack.c.bf16 %v708, %v704
        %v836 = vpack.c.bf16 %v710, %v706
        %v837 = vpack.c.bf16 %v716, %v712
        %v838 = vpack.c.bf16 %v718, %v714
        %v839 = vpack.c.bf16 %v724, %v720
        %v840 = vpack.c.bf16 %v726, %v722
        %v841 = vpack.c.bf16 %v732, %v728
        %v842 = vpack.c.bf16 %v734, %v730
        %v843 = vpack.c.bf16 %v740, %v736
        %v844 = vpack.c.bf16 %v742, %v738
        %845 = vmatprep.subr.bf16.mxu0 %v844
        %846 = vmatpush1.bf16.msra.mxu0 %v843
        %847 = vmatprep.subr.bf16.mxu0 %v842
        %848 = vmatpush1.bf16.msra.mxu0 %v841
        %849 = vmatprep.subr.bf16.mxu0 %v840
        %850 = vmatpush1.bf16.msra.mxu0 %v839
        %851 = vmatprep.subr.bf16.mxu0 %v838
        %852 = vmatpush1.bf16.msra.mxu0 %v837
        %853 = vmatprep.subr.bf16.mxu0 %v836
        %854 = vmatpush1.bf16.msra.mxu0 %v835
        %855 = vmatprep.subr.bf16.mxu0 %v834
        %856 = vmatpush1.bf16.msra.mxu0 %v833
        %857 = vmatprep.subr.bf16.mxu0 %v832
        %858 = vmatpush1.bf16.msra.mxu0 %v831
        %859 = vmatprep.subr.bf16.mxu0 %v830
        %860 = vmatpush1.bf16.msra.mxu0 %v829
        %861 = vmatprep.subr.bf16.mxu0 0
        %862 = vmatpush2.bf16.msra.mxu0 0
        %863 = vmatprep.subr.bf16.mxu0 0
        %864 = vmatpush2.bf16.msra.mxu0 0
        %865 = vmatprep.subr.bf16.mxu0 0
        %866 = vmatpush2.bf16.msra.mxu0 0
        %867 = vmatprep.subr.bf16.mxu0 0
        %868 = vmatpush2.bf16.msra.mxu0 0
        %869 = vmatprep.subr.bf16.mxu0 0
        %870 = vmatpush2.bf16.msra.mxu0 0
        %871 = vmatprep.subr.bf16.mxu0 0
        %872 = vmatpush2.bf16.msra.mxu0 0
        %873 = vmatprep.subr.bf16.mxu0 0
        %874 = vmatpush2.bf16.msra.mxu0 0
        %875 = vmatprep.subr.bf16.mxu0 0
        %876 = vmatpush2.bf16.msra.mxu0 0
        %877 = vmatprep.mubr.bf16.mxu0 0
        %878 = vmatmul.mubr.bf16.gmra.mxu0 %v828
        %v879 = vpop.f32.mrf.mxu0
        %v880 = vadd.f32 0.0, %v879
        %v881 = vpop.f32.mrf.mxu0
        %v882 = vadd.f32 0.0, %v881
        %v883 = vpop.f32.mrf.mxu0
        %v884 = vpop.f32.mrf.mxu0
        %885 = vdwg.mxu0
        %v886 = vadd.f32 %v826, %v880
        %v887 = vadd.f32 %v827, %v882
        %v890 = vcombine.low %v886, %v887
        %892 = vst [vmem:[#allocation4] sm:$0xff] %v890
        %893 = vst.msk [vmem:[#allocation2] sm:$0x3] %vm809, %v632
        // Predicated region
        $region53: #{tpu_custom_call.1} parent=43 // pred_check
          %p894 = pneg %p388
        $region54: #{tpu_custom_call.1} parent=43 // pred_check_branch
          %896 = sbr.rel (%p894) target = $region56
        $region55: #{tpu_custom_call.1} parent=43 // pred_region
          %v897 = vld [vmem:[#allocation3] sm:$0x3]
          %v898 = vrcp.pop %v897
          %v899 = vld [vmem:[#allocation4] sm:$0xff]
          %v901 = vlaneseq
          %v902 = vshrl.u32 %v901, 7
          %v903 = vsub.s32 0, %v902
          %v904 = vrot.slane %v898, %v903
          %v905 = vlaneseq
          %v906 = vshrl.u32 %v905, 7
          %v907 = vsub.s32 1, %v906
          %v908 = vrot.slane %v898, %v907
          %v909 = vcombine.low %v904, %v908
          %v911 = vmul.f32 %v899, %v909
          %v912 = vld [vmem:[%s3] sm:$0xff]
          %v913 = vld [vmem:[%s4] sm:$0xff]
          %915 = vset.pattern.permute.xlu0 0
          %916 = vperm.xlu0 %915, %v913
          %v917 = vpop.permute.xlu0 %916
          %v920 = vcombine.high %v911, %v911
          %v922 = vsel %vm426, %v912, 0
          %vm924 = vcmask 1043456
          %v925 = vsel %vm924, %v911, 0
          %v927 = vsel %vm924, %v920, 0
          %929 = vmatprep.subr.mxu0 0.0
          %930 = vmatpush1.msra.mxu0 0.0
          %931 = vmatprep.subr.mxu0 0.0
          %932 = vmatpush1.msra.mxu0 0.0
          %933 = vmatprep.subr.mxu0 0.0
          %934 = vmatpush1.msra.mxu0 0.0
          %935 = vmatprep.subr.mxu0 0.0
          %936 = vmatpush1.msra.mxu0 0.0
          %937 = vmatprep.subr.mxu0 0.0
          %938 = vmatpush1.msra.mxu0 0.0
          %939 = vmatprep.subr.mxu0 0.0
          %940 = vmatpush1.msra.mxu0 0.0
          %941 = vmatprep.subr.mxu0 0.0
          %942 = vmatpush1.msra.mxu0 0.0
          %943 = vmatprep.subr.mxu0 0.0
          %944 = vmatpush1.msra.mxu0 0.0
          %945 = vmatprep.subr.mxu0 0.0
          %946 = vmatpush1.msra.mxu0 0.0
          %947 = vmatprep.subr.mxu0 0.0
          %948 = vmatpush1.msra.mxu0 0.0
          %949 = vmatprep.subr.mxu0 0.0
          %950 = vmatpush1.msra.mxu0 0.0
          %951 = vmatprep.subr.mxu0 0.0
          %952 = vmatpush1.msra.mxu0 0.0
          %953 = vmatprep.subr.mxu0 0.0
          %954 = vmatpush1.msra.mxu0 0.0
          %955 = vmatprep.subr.mxu0 0.0
          %956 = vmatpush1.msra.mxu0 0.0
          %957 = vmatprep.subr.mxu0 0.0
          %958 = vmatpush1.msra.mxu0 0.0
          %959 = vmatprep.subr.mxu0 %v927
          %960 = vmatpush1.msra.mxu0 %v925
          %961 = vmatprep.subr.mxu0 0.0
          %962 = vmatpush2.msra.mxu0 0.0
          %963 = vmatprep.subr.mxu0 0.0
          %964 = vmatpush2.msra.mxu0 0.0
          %965 = vmatprep.subr.mxu0 0.0
          %966 = vmatpush2.msra.mxu0 0.0
          %967 = vmatprep.subr.mxu0 0.0
          %968 = vmatpush2.msra.mxu0 0.0
          %969 = vmatprep.subr.mxu0 0.0
          %970 = vmatpush2.msra.mxu0 0.0
          %971 = vmatprep.subr.mxu0 0.0
          %972 = vmatpush2.msra.mxu0 0.0
          %973 = vmatprep.subr.mxu0 0.0
          %974 = vmatpush2.msra.mxu0 0.0
          %975 = vmatprep.subr.mxu0 0.0
          %976 = vmatpush2.msra.mxu0 0.0
          %977 = vmatprep.subr.mxu0 0.0
          %978 = vmatpush2.msra.mxu0 0.0
          %979 = vmatprep.subr.mxu0 0.0
          %980 = vmatpush2.msra.mxu0 0.0
          %981 = vmatprep.subr.mxu0 0.0
          %982 = vmatpush2.msra.mxu0 0.0
          %983 = vmatprep.subr.mxu0 0.0
          %984 = vmatpush2.msra.mxu0 0.0
          %985 = vmatprep.subr.mxu0 0.0
          %986 = vmatpush2.msra.mxu0 0.0
          %987 = vmatprep.subr.mxu0 0.0
          %988 = vmatpush2.msra.mxu0 0.0
          %989 = vmatprep.subr.mxu0 0.0
          %990 = vmatpush2.msra.mxu0 0.0
          %991 = vmatprep.subr.mxu0 0.0
          %992 = vmatpush2.msra.mxu0 0.0
          %993 = vmatprep.mubr.f32.mxu0 0.0
          %994 = vmatmul.mubr.f32.gmra.mxu0 %v922
          %v995 = vpop.f32.mrf.mxu0
          %v996 = vadd.f32 %v917, %v995
          %v997 = vpop.f32.mrf.mxu0
          %v998 = vadd.f32 %v917, %v997
          %999 = vdwg.mxu0
          %v1000 = vld [vmem:[%s309] sm:$0xff]
          %v1001 = vld [vmem:[%s309 + $0x8] sm:$0xff]
          %v1002 = vadd.f32 %v996, %v1000
          %v1003 = vadd.f32 %v998, %v1001
          %1004 = vst [vmem:[%s360] sm:$0xff] %v1002
          %1005 = vst [vmem:[%s360 + $0x8] sm:$0xff] %v1003
        $region56: #{tpu_custom_call.1} parent=43 // pred_fallthru
          _
        %s1006 = sand.u32 %s206, 1
        %s1007 = scalar_lea.sflag [#allocation7], %s1006
        %s1008 = sand.u32 %s206, 1
        %s1009 = smul.addr %s1008, 16
        %s1010 = scalar_lea.vmem [#allocation8], %s1009
        // Predicated region
        $region57: #{tpu_custom_call.1} parent=43 // pred_check
          %p1011 = pneg %p216
        $region58: #{tpu_custom_call.1} parent=43 // pred_check_branch
          %1013 = sbr.rel (%p1011) target = $region60
        $region59: #{tpu_custom_call.1} parent=43 // pred_region
          %s1014 = smul.u32 2, %s29
          %s1016 = ssub.s32 256, 256
          %1017 = vsyncadd %s1007, %s1016
          %s1018 = smul.addr %s28, 2
          %s1019 = sadd.s32 %s1014, %s1018
          %s1020 = smul.addr %s1019, 128
          %s1021 = scalar_lea.hbm %s6, %s1020
          %s1023 = sshll.u32 %s1010, 4
          %s1024 = int_to_ptr.vmem [resolvable:$true] %s1023
          %1026 = dma.vmem_to_hbm [thread:$0]  %s1024, 256, %s1021, %s1007
        $region60: #{tpu_custom_call.1} parent=43 // pred_fallthru
          _
      $region44: #{tpu_custom_call.1} parent=5 // pred_fallthru
        _
      %p1027 = scmp.le.s32.totalorder 2, %s18
      // Predicated region
      $region61: #{tpu_custom_call.1} parent=5 // pred_check
        %p1028 = pneg %p1027
      $region62: #{tpu_custom_call.1} parent=5 // pred_check_branch
        %1030 = sbr.rel (%p1028) target = $region64
      $region63: #{tpu_custom_call.1} parent=5 // pred_region
        %s1031 = ssub.s32 %s18, 2
        // Predicated region
        $region65: #{tpu_custom_call.1} parent=63 // pred_check
          %p1032 = pneg %p222
        $region66: #{tpu_custom_call.1} parent=63 // pred_check_branch
          %1034 = sbr.rel (%p1032) target = $region68
        $region67: #{tpu_custom_call.1} parent=63 // pred_region
          %s1035 = sand.u32 %s207, 1
          %s1036 = scalar_lea.sflag [#allocation7], %s1035
          %s1037 = sand.u32 %s207, 1
          %s1038 = smul.addr %s1037, 16
          %s1039 = scalar_lea.vmem [#allocation8], %s1038
          %1040 = dma.done %s1036, 256
        $region68: #{tpu_custom_call.1} parent=63 // pred_fallthru
          _
      $region64: #{tpu_custom_call.1} parent=5 // pred_fallthru
        _
    $region6: #{tpu_custom_call.1} parent=1 // loop_footer
      %s22 = sadd.s32 1, %s18
    $region7: #{tpu_custom_call.1} parent=1 // loop_footer_branch
      %17 = sbr.rel target = $region3
    $region8: #{tpu_custom_call.1} parent=1 // loop_exit
      _
    %1041 = vsyncpa [#allocation6], 1
    %s1042 = scalar_lea.sflag [#allocation6], 1
    %1043 = vsyncpa %s1042, 1
    %1044 = vsyncpa [#allocation7], 1
    %s1045 = scalar_lea.sflag [#allocation7], 1
    %1046 = vsyncpa %s1045, 1

</llo_original>
